<compile_context>
chip_gen: v6e
topology: v6e:2x2x1
jax: 0.10.0
libtpu: 0.0.40
codegen_flags: <defaults>
</compile_context>

<pallas_src>
import jax
import jax.numpy as jnp
from jax.experimental import pallas as pl
from jax.experimental.pallas import tpu as pltpu

EPS = 1e-5
H3_PAD = 128    # third hidden layer (64) padded to a full 128-lane tile
OUT_PAD = 128   # final output (1) padded to a full 128-lane tile


def improved_classifier_kernel(
    x_ref,
    w1_ref, b1_ref,
    w2_ref, b2_ref,
    w3_ref, b3_ref,
    w4_ref, b4_ref,
    o_ref,
):
    # BN is pre-folded into (W, b); dropout is identity in eval mode.
    # TODO(synk): training-mode BatchNorm statistics / stochastic Dropout are
    # not implemented (eval-mode forward only).
    h = x_ref[...]                                                  # bf16 (TB, 768)
    h = jnp.maximum(
        jnp.dot(h, w1_ref[...], preferred_element_type=jnp.float32) + b1_ref[...],
        0.0)
    h = jnp.maximum(
        jnp.dot(h.astype(jnp.bfloat16), w2_ref[...],
                preferred_element_type=jnp.float32) + b2_ref[...],
        0.0)
    h = jnp.maximum(
        jnp.dot(h.astype(jnp.bfloat16), w3_ref[...],
                preferred_element_type=jnp.float32) + b3_ref[...],
        0.0)
    o_ref[...] = (
        jnp.dot(h.astype(jnp.bfloat16), w4_ref[...],
                preferred_element_type=jnp.float32) + b4_ref[...]
    ).astype(o_ref.dtype)


def _fold_bn(w, b, gamma, beta, mean, var):
    """Fold eval-mode BatchNorm1d into a Linear.  w: (in, out)."""
    scale = gamma * jax.lax.rsqrt(var + EPS)          # (out,)
    w_f = w * scale[None, :]
    b_f = (b - mean) * scale + beta
    return w_f, b_f


def improved_classifier_forward(x, params, *, tb=512):
    """x: (B, input_dim) f32.  params: dict of arrays (see init_params)."""
    B, D = x.shape

    # ---- fold BatchNorm (running stats) into each Linear --------------------
    w1, b1 = _fold_bn(params["w1"].T, params["b1"], params["gamma1"],
                      params["beta1"], params["mean1"], params["var1"])
    w2, b2 = _fold_bn(params["w2"].T, params["b2"], params["gamma2"],
                      params["beta2"], params["mean2"], params["var2"])
    w3, b3 = _fold_bn(params["w3"].T, params["b3"], params["gamma3"],
                      params["beta3"], params["mean3"], params["var3"])
    w4, b4 = params["w4"].T, params["b4"]             # (64, 1), (1,)

    # ---- pad the narrow tail to full 128-lane width (zeros are a no-op) -----
    w3 = jnp.pad(w3, ((0, 0), (0, H3_PAD - w3.shape[1])))
    b3 = jnp.pad(b3, (0, H3_PAD - b3.shape[0]))
    w4 = jnp.pad(w4, ((0, H3_PAD - w4.shape[0]), (0, OUT_PAD - w4.shape[1])))
    b4 = jnp.pad(b4, (0, OUT_PAD - b4.shape[0]))

    # ---- dtypes: bf16 MXU operands, f32 bias / activation math --------------
    weights = [w.astype(jnp.bfloat16) for w in (w1, w2, w3, w4)]
    biases = [b.reshape(1, -1).astype(jnp.float32) for b in (b1, b2, b3, b4)]
    x_b = x.astype(jnp.bfloat16)

    # ---- batch tiling --------------------------------------------------------
    tb = min(tb, B)
    n_blk = pl.cdiv(B, tb)
    Bp = n_blk * tb
    if Bp != B:
        x_b = jnp.pad(x_b, ((0, Bp - B), (0, 0)))

    x_spec = pl.BlockSpec((tb, D), lambda i: (i, 0))

    def resident(shape):                              # weights stay VMEM-resident
        return pl.BlockSpec(shape, lambda i: (0, 0))

    in_specs = [x_spec]
    args = [x_b]
    for w, b in zip(weights, biases):
        in_specs += [resident(w.shape), resident(b.shape)]
        args += [w, b]

    out = pl.pallas_call(
        improved_classifier_kernel,
        out_shape=jax.ShapeDtypeStruct((Bp, OUT_PAD), jnp.float32),
        grid=(n_blk,),
        in_specs=in_specs,
        out_specs=pl.BlockSpec((tb, OUT_PAD), lambda i: (i, 0)),
        compiler_params=pltpu.CompilerParams(
            dimension_semantics=("parallel",),
            vmem_limit_bytes=32 * 1024 * 1024,
        ),
    )(*args)

    return out[:B, :1]                                # drop padded rows / columns


def init_params(key, input_dim=768):
    dims = [(input_dim, 256), (256, 128), (128, 64), (64, 1)]
    params = {}
    keys = jax.random.split(key, 16)
    k = 0
    for i, (din, dout) in enumerate(dims, start=1):
        params[f"w{i}"] = 0.02 * jax.random.normal(keys[k], (dout, din), jnp.float32); k += 1
        params[f"b{i}"] = 0.01 * jax.random.normal(keys[k], (dout,), jnp.float32); k += 1
        if i < 4:  # BatchNorm1d params for the first three blocks
            params[f"gamma{i}"] = 1.0 + 0.1 * jax.random.normal(keys[k], (dout,), jnp.float32); k += 1
            params[f"beta{i}"] = 0.1 * jax.random.normal(keys[k], (dout,), jnp.float32); k += 1
            params[f"mean{i}"] = 0.05 * jax.random.normal(keys[k], (dout,), jnp.float32); k += 1
            params[f"var{i}"] = jnp.ones((dout,), jnp.float32) * 0.9
            k += 1
    return params


def reference_forward(x, params):
    """Pure-JAX f32 eval-mode reference for correctness checking."""
    h = x
    for i in (1, 2, 3):
        y = h @ params[f"w{i}"].T + params[f"b{i}"]
        scale = params[f"gamma{i}"] * jax.lax.rsqrt(params[f"var{i}"] + EPS)
        y = (y - params[f"mean{i}"]) * scale + params[f"beta{i}"]
        h = jnp.maximum(y, 0.0)
    return h @ params["w4"].T + params["b4"]


if __name__ == "__main__":
    key = jax.random.PRNGKey(0)
    k_x, k_p = jax.random.split(key)

    B, INPUT_DIM = 8, 768
    x = jax.random.normal(k_x, (B, INPUT_DIM), jnp.float32)
    params = init_params(k_p, INPUT_DIM)

    out = jax.block_until_ready(improved_classifier_forward(x, params))
    ref = reference_forward(x, params)

    assert out.shape == (B, 1), out.shape
    max_err = jnp.max(jnp.abs(out - ref))
    # bf16 MXU operands -> compare against the f32 reference at bf16 tolerance.
    assert jnp.allclose(out, ref, atol=5e-2, rtol=5e-2), f"max abs err {max_err}"
    print("KERNEL_OK")
</pallas_src>

<mosaic_0001>
module attributes {stable_mosaic.version = 11 : i64} {
  func.func @improved_classifier_kernel(%arg0: i32, %arg1: memref<8x768xbf16, #tpu.memory_space<vmem>>, %arg2: memref<768x256xbf16, #tpu.memory_space<vmem>>, %arg3: memref<1x256xf32, #tpu.memory_space<vmem>>, %arg4: memref<256x128xbf16, #tpu.memory_space<vmem>>, %arg5: memref<1x128xf32, #tpu.memory_space<vmem>>, %arg6: memref<128x128xbf16, #tpu.memory_space<vmem>>, %arg7: memref<1x128xf32, #tpu.memory_space<vmem>>, %arg8: memref<128x128xbf16, #tpu.memory_space<vmem>>, %arg9: memref<1x128xf32, #tpu.memory_space<vmem>>, %arg10: memref<8x128xf32, #tpu.memory_space<vmem>>) attributes {dimension_semantics = [#tpu.dimension_semantics<parallel>], iteration_bounds = array<i64: 1>, scalar_prefetch = 0 : i64, scratch_operands = 0 : i64, tpu.core_type = #tpu.core_type<tc>, window_params = [{transform_indices = @transform_0, window_bounds = array<i64: 8, 768>}, {pipeline_mode = #tpu.pipeline_mode<synchronous>, transform_indices = @transform_1, window_bounds = array<i64: 768, 256>}, {pipeline_mode = #tpu.pipeline_mode<synchronous>, transform_indices = @transform_2, window_bounds = array<i64: 1, 256>}, {pipeline_mode = #tpu.pipeline_mode<synchronous>, transform_indices = @transform_3, window_bounds = array<i64: 256, 128>}, {pipeline_mode = #tpu.pipeline_mode<synchronous>, transform_indices = @transform_4, window_bounds = array<i64: 1, 128>}, {pipeline_mode = #tpu.pipeline_mode<synchronous>, transform_indices = @transform_5, window_bounds = array<i64: 128, 128>}, {pipeline_mode = #tpu.pipeline_mode<synchronous>, transform_indices = @transform_6, window_bounds = array<i64: 1, 128>}, {pipeline_mode = #tpu.pipeline_mode<synchronous>, transform_indices = @transform_7, window_bounds = array<i64: 128, 128>}, {pipeline_mode = #tpu.pipeline_mode<synchronous>, transform_indices = @transform_8, window_bounds = array<i64: 1, 128>}, {transform_indices = @transform_9, window_bounds = array<i64: 8, 128>}]} {
    %c0 = arith.constant 0 : index
    %c0_0 = arith.constant 0 : index
    %0 = vector.load %arg1[%c0, %c0_0] : memref<8x768xbf16, #tpu.memory_space<vmem>>, vector<8x768xbf16>
    %c0_1 = arith.constant 0 : index
    %c0_2 = arith.constant 0 : index
    %1 = vector.load %arg2[%c0_1, %c0_2] : memref<768x256xbf16, #tpu.memory_space<vmem>>, vector<768x256xbf16>
    %cst = arith.constant dense<0.000000e+00> : vector<8x256xf32>
    %2 = tpu.matmul %0, %1, %cst {dimension_numbers = #tpu.dot_dimension_numbers<[1], [0], [0], [1], [0, 0, 1, 1], [], []>} : vector<8x768xbf16>, vector<768x256xbf16>, vector<8x256xf32> -> vector<8x256xf32>
    %c0_3 = arith.constant 0 : index
    %c0_4 = arith.constant 0 : index
    %3 = vector.load %arg3[%c0_3, %c0_4] : memref<1x256xf32, #tpu.memory_space<vmem>>, vector<1x256xf32>
    %4 = vector.broadcast %3 : vector<1x256xf32> to vector<8x256xf32>
    %5 = arith.addf %2, %4 : vector<8x256xf32>
    %cst_5 = arith.constant 0.000000e+00 : f32
    %6 = vector.broadcast %cst_5 : f32 to vector<8x256xf32>
    %7 = arith.maximumf %5, %6 : vector<8x256xf32>
    %8 = arith.truncf %7 : vector<8x256xf32> to vector<8x256xbf16>
    %c0_6 = arith.constant 0 : index
    %c0_7 = arith.constant 0 : index
    %9 = vector.load %arg4[%c0_6, %c0_7] : memref<256x128xbf16, #tpu.memory_space<vmem>>, vector<256x128xbf16>
    %cst_8 = arith.constant dense<0.000000e+00> : vector<8x128xf32>
    %10 = tpu.matmul %8, %9, %cst_8 {dimension_numbers = #tpu.dot_dimension_numbers<[1], [0], [0], [1], [0, 0, 1, 1], [], []>} : vector<8x256xbf16>, vector<256x128xbf16>, vector<8x128xf32> -> vector<8x128xf32>
    %c0_9 = arith.constant 0 : index
    %c0_10 = arith.constant 0 : index
    %11 = vector.load %arg5[%c0_9, %c0_10] : memref<1x128xf32, #tpu.memory_space<vmem>>, vector<1x128xf32>
    %12 = vector.broadcast %11 : vector<1x128xf32> to vector<8x128xf32>
    %13 = arith.addf %10, %12 : vector<8x128xf32>
    %cst_11 = arith.constant 0.000000e+00 : f32
    %14 = vector.broadcast %cst_11 : f32 to vector<8x128xf32>
    %15 = arith.maximumf %13, %14 : vector<8x128xf32>
    %16 = arith.truncf %15 : vector<8x128xf32> to vector<8x128xbf16>
    %c0_12 = arith.constant 0 : index
    %c0_13 = arith.constant 0 : index
    %17 = vector.load %arg6[%c0_12, %c0_13] : memref<128x128xbf16, #tpu.memory_space<vmem>>, vector<128x128xbf16>
    %cst_14 = arith.constant dense<0.000000e+00> : vector<8x128xf32>
    %18 = tpu.matmul %16, %17, %cst_14 {dimension_numbers = #tpu.dot_dimension_numbers<[1], [0], [0], [1], [0, 0, 1, 1], [], []>} : vector<8x128xbf16>, vector<128x128xbf16>, vector<8x128xf32> -> vector<8x128xf32>
    %c0_15 = arith.constant 0 : index
    %c0_16 = arith.constant 0 : index
    %19 = vector.load %arg7[%c0_15, %c0_16] : memref<1x128xf32, #tpu.memory_space<vmem>>, vector<1x128xf32>
    %20 = vector.broadcast %19 : vector<1x128xf32> to vector<8x128xf32>
    %21 = arith.addf %18, %20 : vector<8x128xf32>
    %cst_17 = arith.constant 0.000000e+00 : f32
    %22 = vector.broadcast %cst_17 : f32 to vector<8x128xf32>
    %23 = arith.maximumf %21, %22 : vector<8x128xf32>
    %24 = arith.truncf %23 : vector<8x128xf32> to vector<8x128xbf16>
    %c0_18 = arith.constant 0 : index
    %c0_19 = arith.constant 0 : index
    %25 = vector.load %arg8[%c0_18, %c0_19] : memref<128x128xbf16, #tpu.memory_space<vmem>>, vector<128x128xbf16>
    %cst_20 = arith.constant dense<0.000000e+00> : vector<8x128xf32>
    %26 = tpu.matmul %24, %25, %cst_20 {dimension_numbers = #tpu.dot_dimension_numbers<[1], [0], [0], [1], [0, 0, 1, 1], [], []>} : vector<8x128xbf16>, vector<128x128xbf16>, vector<8x128xf32> -> vector<8x128xf32>
    %c0_21 = arith.constant 0 : index
    %c0_22 = arith.constant 0 : index
    %27 = vector.load %arg9[%c0_21, %c0_22] : memref<1x128xf32, #tpu.memory_space<vmem>>, vector<1x128xf32>
    %28 = vector.broadcast %27 : vector<1x128xf32> to vector<8x128xf32>
    %29 = arith.addf %26, %28 : vector<8x128xf32>
    %c0_23 = arith.constant 0 : index
    %c0_24 = arith.constant 0 : index
    %30 = vector.load %arg10[%c0_23, %c0_24] : memref<8x128xf32, #tpu.memory_space<vmem>>, vector<8x128xf32>
    tpu.vector_store %arg10[%c0_23, %c0_24], %29 {strides = array<i32>} : memref<8x128xf32, #tpu.memory_space<vmem>>, vector<8x128xf32>,
    return
  }
  func.func @transform_0(%arg0: i32) -> (i32, i32) {
    %c0_i32 = arith.constant 0 : i32
    %c0_i32_0 = arith.constant 0 : i32
    return %arg0, %c0_i32 : i32, i32
  }
  func.func @transform_1(%arg0: i32) -> (i32, i32) {
    %c0_i32 = arith.constant 0 : i32
    %c0_i32_0 = arith.constant 0 : i32
    %c0_i32_1 = arith.constant 0 : i32
    return %c0_i32, %c0_i32_0 : i32, i32
  }
  func.func @transform_2(%arg0: i32) -> (i32, i32) {
    %c0_i32 = arith.constant 0 : i32
    %c0_i32_0 = arith.constant 0 : i32
    %c0_i32_1 = arith.constant 0 : i32
    return %c0_i32, %c0_i32_0 : i32, i32
  }
  func.func @transform_3(%arg0: i32) -> (i32, i32) {
    %c0_i32 = arith.constant 0 : i32
    %c0_i32_0 = arith.constant 0 : i32
    %c0_i32_1 = arith.constant 0 : i32
    return %c0_i32, %c0_i32_0 : i32, i32
  }
  func.func @transform_4(%arg0: i32) -> (i32, i32) {
    %c0_i32 = arith.constant 0 : i32
    %c0_i32_0 = arith.constant 0 : i32
    %c0_i32_1 = arith.constant 0 : i32
    return %c0_i32, %c0_i32_0 : i32, i32
  }
  func.func @transform_5(%arg0: i32) -> (i32, i32) {
    %c0_i32 = arith.constant 0 : i32
    %c0_i32_0 = arith.constant 0 : i32
    %c0_i32_1 = arith.constant 0 : i32
    return %c0_i32, %c0_i32_0 : i32, i32
  }
  func.func @transform_6(%arg0: i32) -> (i32, i32) {
    %c0_i32 = arith.constant 0 : i32
    %c0_i32_0 = arith.constant 0 : i32
    %c0_i32_1 = arith.constant 0 : i32
    return %c0_i32, %c0_i32_0 : i32, i32
  }
  func.func @transform_7(%arg0: i32) -> (i32, i32) {
    %c0_i32 = arith.constant 0 : i32
    %c0_i32_0 = arith.constant 0 : i32
    %c0_i32_1 = arith.constant 0 : i32
    return %c0_i32, %c0_i32_0 : i32, i32
  }
  func.func @transform_8(%arg0: i32) -> (i32, i32) {
    %c0_i32 = arith.constant 0 : i32
    %c0_i32_0 = arith.constant 0 : i32
    %c0_i32_1 = arith.constant 0 : i32
    return %c0_i32, %c0_i32_0 : i32, i32
  }
  func.func @transform_9(%arg0: i32) -> (i32, i32) {
    %c0_i32 = arith.constant 0 : i32
    %c0_i32_0 = arith.constant 0 : i32
    return %arg0, %c0_i32 : i32, i32
  }
}

</mosaic_0001>

<llo_original>
// kernel: tpu_custom_call.1
$region0: #{tpu_custom_call.1}
  #allocation0 [shape = 'u32[]', space=smem, size = 0x4, offset = 0x4, fixed_abs, tag = 'smem constant byte address 0x4 - core index']
  #allocation1 [shape = 'u32[144,128]{1,0:T(1,128)}', space=vmem, size = 0x12000, scoped, tag = 'internal scratch']
  %s0 = inlined_call_operand.hbm [shape: bf16[8,768], index: 0, kind: input, shape index: {}]
  %s1 = inlined_call_operand.hbm [shape: bf16[768,256], index: 1, kind: input, shape index: {}]
  %s2 = inlined_call_operand.vmem [shape: f32[1,256], index: 2, kind: input, shape index: {}]
  %s3 = inlined_call_operand.hbm [shape: bf16[256,128], index: 3, kind: input, shape index: {}]
  %s4 = inlined_call_operand.vmem [shape: f32[1,128], index: 4, kind: input, shape index: {}]
  %s5 = inlined_call_operand.hbm [shape: bf16[128,128], index: 5, kind: input, shape index: {}]
  %s6 = inlined_call_operand.vmem [shape: f32[1,128], index: 6, kind: input, shape index: {}]
  %s7 = inlined_call_operand.hbm [shape: bf16[128,128], index: 7, kind: input, shape index: {}]
  %s8 = inlined_call_operand.vmem [shape: f32[1,128], index: 8, kind: input, shape index: {}]
  %s9 = inlined_call_operand.hbm [shape: f32[8,128], index: 9, kind: output, shape index: {}]
  %s10 = sld [smem:[#allocation0]]
  $region66: #{tpu_custom_call.1} parent=0
    _
  %s12 = ssub.s32 1, %s10
  %s13 = scalar_select 0, %s12, %s10
  $region1: #{tpu_custom_call.1} parent=0
    #allocation2 [shape = 'u8[12288]{0}', space=vmem, size = 0x3000, scoped, tag = 'input window, operand 0, single buffered']
    #allocation3 [shape = 's32[1]{0}', space=sflag, size = 0x4, scoped, tag = 'scoped memory for tpu_custom_call.1']
    #allocation4 [shape = 's32[1]{0}', space=sflag, size = 0x4, scoped, tag = 'scoped memory for tpu_custom_call.1']
    #allocation5 [shape = 'u8[393216]{0}', space=vmem, size = 0x60000, scoped, tag = 'input window, operand 1, single buffered']
    #allocation6 [shape = 's32[1]{0}', space=sflag, size = 0x4, scoped, tag = 'scoped memory for tpu_custom_call.1']
    #allocation7 [shape = 'u8[65536]{0}', space=vmem, size = 0x10000, scoped, tag = 'input window, operand 3, single buffered']
    #allocation8 [shape = 'u8[32768]{0}', space=vmem, size = 0x8000, scoped, tag = 'input window, operand 5, single buffered']
    #allocation9 [shape = 's32[1]{0}', space=sflag, size = 0x4, scoped, tag = 'scoped memory for tpu_custom_call.1']
    #allocation10 [shape = 'u8[32768]{0}', space=vmem, size = 0x8000, scoped, tag = 'input window, operand 7, single buffered']
    #allocation11 [shape = 'u8[4096]{0}', space=vmem, size = 0x1000, scoped, tag = 'output window, operand 0, single buffered']
    %14 = vsyncpa [#allocation3], 0
    %15 = vsyncpa [#allocation6], 0
    %16 = vsyncpa [#allocation9], 0
    %17 = vsyncpa [#allocation4], 0
    // Predicated region
    $region2: #{tpu_custom_call.1} parent=1 // pred_check
      _
    $region3: #{tpu_custom_call.1} parent=1 // pred_check_branch
      %19 = sbr.rel (0) target = $region5
    $region4: #{tpu_custom_call.1} parent=1 // pred_region
      %s21 = ssub.s32 384, 384
      %22 = vsyncadd [#allocation3], %s21
      %s24 = sshll.u32 [#allocation2], 4
      %s25 = int_to_ptr.vmem [resolvable:$true] %s24
      %27 = dma.hbm_to_vmem [thread:$0]  %s0, 384, %s25, [#allocation3]
    $region5: #{tpu_custom_call.1} parent=1 // pred_fallthru
      _
    // Predicated region
    $region6: #{tpu_custom_call.1} parent=1 // pred_check
      _
    $region7: #{tpu_custom_call.1} parent=1 // pred_check_branch
      %29 = sbr.rel (0) target = $region9
    $region8: #{tpu_custom_call.1} parent=1 // pred_region
      %s31 = ssub.s32 12288, 12288
      %32 = vsyncadd [#allocation6], %s31
      %s33 = sshll.u32 [#allocation5], 4
      %s34 = int_to_ptr.vmem [resolvable:$true] %s33
      %39 = dma.hbm_to_vmem [thread:$0]  %s1, 12288, %s34, [#allocation6], 128, 128, 8
    $region9: #{tpu_custom_call.1} parent=1 // pred_fallthru
      _
    // Predicated region
    $region10: #{tpu_custom_call.1} parent=1 // pred_check
      _
    $region11: #{tpu_custom_call.1} parent=1 // pred_check_branch
      %41 = sbr.rel (0) target = $region13
    $region12: #{tpu_custom_call.1} parent=1 // pred_region
      _
    $region13: #{tpu_custom_call.1} parent=1 // pred_fallthru
      _
    // Predicated region
    $region14: #{tpu_custom_call.1} parent=1 // pred_check
      _
    $region15: #{tpu_custom_call.1} parent=1 // pred_check_branch
      %43 = sbr.rel (0) target = $region17
    $region16: #{tpu_custom_call.1} parent=1 // pred_region
      %s45 = ssub.s32 2048, 2048
      %46 = vsyncadd [#allocation6], %s45
      %s47 = sshll.u32 [#allocation7], 4
      %s48 = int_to_ptr.vmem [resolvable:$true] %s47
      %53 = dma.hbm_to_vmem [thread:$0]  %s3, 2048, %s48, [#allocation6], 64, 64, 4
    $region17: #{tpu_custom_call.1} parent=1 // pred_fallthru
      _
    // Predicated region
    $region18: #{tpu_custom_call.1} parent=1 // pred_check
      _
    $region19: #{tpu_custom_call.1} parent=1 // pred_check_branch
      %55 = sbr.rel (0) target = $region21
    $region20: #{tpu_custom_call.1} parent=1 // pred_region
      _
    $region21: #{tpu_custom_call.1} parent=1 // pred_fallthru
      _
    // Predicated region
    $region22: #{tpu_custom_call.1} parent=1 // pred_check
      _
    $region23: #{tpu_custom_call.1} parent=1 // pred_check_branch
      %57 = sbr.rel (0) target = $region25
    $region24: #{tpu_custom_call.1} parent=1 // pred_region
      %s59 = ssub.s32 1024, 1024
      %60 = vsyncadd [#allocation9], %s59
      %s61 = sshll.u32 [#allocation8], 4
      %s62 = int_to_ptr.vmem [resolvable:$true] %s61
      %67 = dma.hbm_to_vmem [thread:$0]  %s5, 1024, %s62, [#allocation9], 64, 64, 4
    $region25: #{tpu_custom_call.1} parent=1 // pred_fallthru
      _
    // Predicated region
    $region26: #{tpu_custom_call.1} parent=1 // pred_check
      _
    $region27: #{tpu_custom_call.1} parent=1 // pred_check_branch
      %69 = sbr.rel (0) target = $region29
    $region28: #{tpu_custom_call.1} parent=1 // pred_region
      _
    $region29: #{tpu_custom_call.1} parent=1 // pred_fallthru
      _
    // Predicated region
    $region30: #{tpu_custom_call.1} parent=1 // pred_check
      _
    $region31: #{tpu_custom_call.1} parent=1 // pred_check_branch
      %71 = sbr.rel (0) target = $region33
    $region32: #{tpu_custom_call.1} parent=1 // pred_region
      %s73 = ssub.s32 1024, 1024
      %74 = vsyncadd [#allocation9], %s73
      %s75 = sshll.u32 [#allocation10], 4
      %s76 = int_to_ptr.vmem [resolvable:$true] %s75
      %81 = dma.hbm_to_vmem [thread:$0]  %s7, 1024, %s76, [#allocation9], 64, 64, 4
    $region33: #{tpu_custom_call.1} parent=1 // pred_fallthru
      _
    // Predicated region
    $region34: #{tpu_custom_call.1} parent=1 // pred_check
      _
    $region35: #{tpu_custom_call.1} parent=1 // pred_check_branch
      %83 = sbr.rel (0) target = $region37
    $region36: #{tpu_custom_call.1} parent=1 // pred_region
      _
    $region37: #{tpu_custom_call.1} parent=1 // pred_fallthru
      _
    // Predicated region
    $region38: #{tpu_custom_call.1} parent=1 // pred_check
      _
    $region39: #{tpu_custom_call.1} parent=1 // pred_check_branch
      %85 = sbr.rel (0) target = $region41
    $region40: #{tpu_custom_call.1} parent=1 // pred_region
      %86 = dma.done [#allocation3], 384
    $region41: #{tpu_custom_call.1} parent=1 // pred_fallthru
      _
    // Predicated region
    $region42: #{tpu_custom_call.1} parent=1 // pred_check
      _
    $region43: #{tpu_custom_call.1} parent=1 // pred_check_branch
      %88 = sbr.rel (0) target = $region45
    $region44: #{tpu_custom_call.1} parent=1 // pred_region
      %89 = dma.done [#allocation6], 12288
    $region45: #{tpu_custom_call.1} parent=1 // pred_fallthru
      _
    // Predicated region
    $region46: #{tpu_custom_call.1} parent=1 // pred_check
      _
    $region47: #{tpu_custom_call.1} parent=1 // pred_check_branch
      %91 = sbr.rel (0) target = $region49
    $region48: #{tpu_custom_call.1} parent=1 // pred_region
      %92 = dma.done [#allocation6], 2048
    $region49: #{tpu_custom_call.1} parent=1 // pred_fallthru
      _
    // Predicated region
    $region50: #{tpu_custom_call.1} parent=1 // pred_check
      _
    $region51: #{tpu_custom_call.1} parent=1 // pred_check_branch
      %94 = sbr.rel (0) target = $region53
    $region52: #{tpu_custom_call.1} parent=1 // pred_region
      %95 = dma.done [#allocation9], 1024
    $region53: #{tpu_custom_call.1} parent=1 // pred_fallthru
      _
    // Predicated region
    $region54: #{tpu_custom_call.1} parent=1 // pred_check
      _
    $region55: #{tpu_custom_call.1} parent=1 // pred_check_branch
      %97 = sbr.rel (0) target = $region57
    $region56: #{tpu_custom_call.1} parent=1 // pred_region
      %98 = dma.done [#allocation9], 1024
    $region57: #{tpu_custom_call.1} parent=1 // pred_fallthru
      _
    %v100 = vld [vmem:[#allocation2] sm:$0xff]
    %v101 = vld [vmem:[#allocation2 + $0x8] sm:$0xff]
    %v102 = vld [vmem:[#allocation2 + $0x10] sm:$0xff]
    %v103 = vld [vmem:[#allocation5] sm:$0xff]
    %v104 = vld [vmem:[#allocation5 + $0x8] sm:$0xff]
    %v105 = vld [vmem:[#allocation5 + $0x10] sm:$0xff]
    %v106 = vld [vmem:[#allocation5 + $0x18] sm:$0xff]
    %v107 = vld [vmem:[#allocation5 + $0x20] sm:$0xff]
    %v108 = vld [vmem:[#allocation5 + $0x28] sm:$0xff]
    %v109 = vld [vmem:[#allocation5 + $0x30] sm:$0xff]
    %v110 = vld [vmem:[#allocation5 + $0x38] sm:$0xff]
    %v111 = vld [vmem:[#allocation5 + $0x40] sm:$0xff]
    %v112 = vld [vmem:[#allocation5 + $0x48] sm:$0xff]
    %v113 = vld [vmem:[#allocation5 + $0x50] sm:$0xff]
    %v114 = vld [vmem:[#allocation5 + $0x58] sm:$0xff]
    %v115 = vld [vmem:[#allocation5 + $0x60] sm:$0xff]
    %v116 = vld [vmem:[#allocation5 + $0x68] sm:$0xff]
    %v117 = vld [vmem:[#allocation5 + $0x70] sm:$0xff]
    %v118 = vld [vmem:[#allocation5 + $0x78] sm:$0xff]
    %v119 = vld [vmem:[#allocation5 + $0x80] sm:$0xff]
    %v120 = vld [vmem:[#allocation5 + $0x88] sm:$0xff]
    %v121 = vld [vmem:[#allocation5 + $0x90] sm:$0xff]
    %v122 = vld [vmem:[#allocation5 + $0x98] sm:$0xff]
    %v123 = vld [vmem:[#allocation5 + $0xa0] sm:$0xff]
    %v124 = vld [vmem:[#allocation5 + $0xa8] sm:$0xff]
    %v125 = vld [vmem:[#allocation5 + $0xb0] sm:$0xff]
    %v126 = vld [vmem:[#allocation5 + $0xb8] sm:$0xff]
    %v127 = vld [vmem:[#allocation5 + $0xc0] sm:$0xff]
    %v128 = vld [vmem:[#allocation5 + $0xc8] sm:$0xff]
    %v129 = vld [vmem:[#allocation5 + $0xd0] sm:$0xff]
    %v130 = vld [vmem:[#allocation5 + $0xd8] sm:$0xff]
    %v131 = vld [vmem:[#allocation5 + $0xe0] sm:$0xff]
    %v132 = vld [vmem:[#allocation5 + $0xe8] sm:$0xff]
    %v133 = vld [vmem:[#allocation5 + $0xf0] sm:$0xff]
    %v134 = vld [vmem:[#allocation5 + $0xf8] sm:$0xff]
    %v135 = vld [vmem:[#allocation5 + $0x100] sm:$0xff]
    %v136 = vld [vmem:[#allocation5 + $0x108] sm:$0xff]
    %v137 = vld [vmem:[#allocation5 + $0x110] sm:$0xff]
    %v138 = vld [vmem:[#allocation5 + $0x118] sm:$0xff]
    %v139 = vld [vmem:[#allocation5 + $0x120] sm:$0xff]
    %v140 = vld [vmem:[#allocation5 + $0x128] sm:$0xff]
    %v141 = vld [vmem:[#allocation5 + $0x130] sm:$0xff]
    %v142 = vld [vmem:[#allocation5 + $0x138] sm:$0xff]
    %v143 = vld [vmem:[#allocation5 + $0x140] sm:$0xff]
    %v144 = vld [vmem:[#allocation5 + $0x148] sm:$0xff]
    %v145 = vld [vmem:[#allocation5 + $0x150] sm:$0xff]
    %v146 = vld [vmem:[#allocation5 + $0x158] sm:$0xff]
    %v147 = vld [vmem:[#allocation5 + $0x160] sm:$0xff]
    %v148 = vld [vmem:[#allocation5 + $0x168] sm:$0xff]
    %v149 = vld [vmem:[#allocation5 + $0x170] sm:$0xff]
    %v150 = vld [vmem:[#allocation5 + $0x178] sm:$0xff]
    %v151 = vld [vmem:[#allocation5 + $0x180] sm:$0xff]
    %v152 = vld [vmem:[#allocation5 + $0x188] sm:$0xff]
    %v153 = vld [vmem:[#allocation5 + $0x190] sm:$0xff]
    %v154 = vld [vmem:[#allocation5 + $0x198] sm:$0xff]
    %v155 = vld [vmem:[#allocation5 + $0x1a0] sm:$0xff]
    %v156 = vld [vmem:[#allocation5 + $0x1a8] sm:$0xff]
    %v157 = vld [vmem:[#allocation5 + $0x1b0] sm:$0xff]
    %v158 = vld [vmem:[#allocation5 + $0x1b8] sm:$0xff]
    %v159 = vld [vmem:[#allocation5 + $0x1c0] sm:$0xff]
    %v160 = vld [vmem:[#allocation5 + $0x1c8] sm:$0xff]
    %v161 = vld [vmem:[#allocation5 + $0x1d0] sm:$0xff]
    %v162 = vld [vmem:[#allocation5 + $0x1d8] sm:$0xff]
    %v163 = vld [vmem:[#allocation5 + $0x1e0] sm:$0xff]
    %v164 = vld [vmem:[#allocation5 + $0x1e8] sm:$0xff]
    %v165 = vld [vmem:[#allocation5 + $0x1f0] sm:$0xff]
    %v166 = vld [vmem:[#allocation5 + $0x1f8] sm:$0xff]
    %v167 = vld [vmem:[#allocation5 + $0x200] sm:$0xff]
    %v168 = vld [vmem:[#allocation5 + $0x208] sm:$0xff]
    %v169 = vld [vmem:[#allocation5 + $0x210] sm:$0xff]
    %v170 = vld [vmem:[#allocation5 + $0x218] sm:$0xff]
    %v171 = vld [vmem:[#allocation5 + $0x220] sm:$0xff]
    %v172 = vld [vmem:[#allocation5 + $0x228] sm:$0xff]
    %v173 = vld [vmem:[#allocation5 + $0x230] sm:$0xff]
    %v174 = vld [vmem:[#allocation5 + $0x238] sm:$0xff]
    %v175 = vld [vmem:[#allocation5 + $0x240] sm:$0xff]
    %v176 = vld [vmem:[#allocation5 + $0x248] sm:$0xff]
    %v177 = vld [vmem:[#allocation5 + $0x250] sm:$0xff]
    %v178 = vld [vmem:[#allocation5 + $0x258] sm:$0xff]
    %v179 = vld [vmem:[#allocation5 + $0x260] sm:$0xff]
    %v180 = vld [vmem:[#allocation5 + $0x268] sm:$0xff]
    %v181 = vld [vmem:[#allocation5 + $0x270] sm:$0xff]
    %v182 = vld [vmem:[#allocation5 + $0x278] sm:$0xff]
    %v183 = vld [vmem:[#allocation5 + $0x280] sm:$0xff]
    %v184 = vld [vmem:[#allocation5 + $0x288] sm:$0xff]
    %v185 = vld [vmem:[#allocation5 + $0x290] sm:$0xff]
    %v186 = vld [vmem:[#allocation5 + $0x298] sm:$0xff]
    %v187 = vld [vmem:[#allocation5 + $0x2a0] sm:$0xff]
    %v188 = vld [vmem:[#allocation5 + $0x2a8] sm:$0xff]
    %v189 = vld [vmem:[#allocation5 + $0x2b0] sm:$0xff]
    %v190 = vld [vmem:[#allocation5 + $0x2b8] sm:$0xff]
    %v191 = vld [vmem:[#allocation5 + $0x2c0] sm:$0xff]
    %v192 = vld [vmem:[#allocation5 + $0x2c8] sm:$0xff]
    %v193 = vld [vmem:[#allocation5 + $0x2d0] sm:$0xff]
    %v194 = vld [vmem:[#allocation5 + $0x2d8] sm:$0xff]
    %v195 = vld [vmem:[#allocation5 + $0x2e0] sm:$0xff]
    %v196 = vld [vmem:[#allocation5 + $0x2e8] sm:$0xff]
    %v197 = vld [vmem:[#allocation5 + $0x2f0] sm:$0xff]
    %v198 = vld [vmem:[#allocation5 + $0x2f8] sm:$0xff]
    %v199 = vld [vmem:[%s2] sm:$0x3]
    %v201 = vlaneseq
    %v202 = vshrl.u32 %v201, 7
    %v203 = vsub.s32 0, %v202
    %v204 = vrot.slane %v199, %v203
    %v205 = vlaneseq
    %v206 = vshrl.u32 %v205, 7
    %v207 = vsub.s32 1, %v206
    %v208 = vrot.slane %v199, %v207
    %v214 = vunpack.c.l.b16 %v100
    %v215 = vunpack.c.h.b16 %v100
    %v216 = vunpack.c.l.b16 %v101
    %v217 = vunpack.c.h.b16 %v101
    %v218 = vunpack.c.l.b16 %v102
    %v219 = vunpack.c.h.b16 %v102
    %v220 = vpack.c.b16 %v214, %v214
    %v221 = vpack.c.b16 %v215, %v215
    %v222 = vpack.c.b16 %v216, %v216
    %v223 = vpack.c.b16 %v217, %v217
    %v224 = vpack.c.b16 %v218, %v218
    %v225 = vpack.c.b16 %v219, %v219
    %v328 = vunpack.c.l.b16 %v103
    %v329 = vunpack.c.h.b16 %v103
    %v330 = vunpack.c.l.b16 %v104
    %v331 = vunpack.c.h.b16 %v104
    %v332 = vunpack.c.l.b16 %v105
    %v333 = vunpack.c.h.b16 %v105
    %v334 = vunpack.c.l.b16 %v106
    %v335 = vunpack.c.h.b16 %v106
    %v336 = vunpack.c.l.b16 %v107
    %v337 = vunpack.c.h.b16 %v107
    %v338 = vunpack.c.l.b16 %v108
    %v339 = vunpack.c.h.b16 %v108
    %v340 = vunpack.c.l.b16 %v109
    %v341 = vunpack.c.h.b16 %v109
    %v342 = vunpack.c.l.b16 %v110
    %v343 = vunpack.c.h.b16 %v110
    %v344 = vunpack.c.l.b16 %v111
    %v345 = vunpack.c.h.b16 %v111
    %v346 = vunpack.c.l.b16 %v112
    %v347 = vunpack.c.h.b16 %v112
    %v348 = vunpack.c.l.b16 %v113
    %v349 = vunpack.c.h.b16 %v113
    %v350 = vunpack.c.l.b16 %v114
    %v351 = vunpack.c.h.b16 %v114
    %v352 = vunpack.c.l.b16 %v115
    %v353 = vunpack.c.h.b16 %v115
    %v354 = vunpack.c.l.b16 %v116
    %v355 = vunpack.c.h.b16 %v116
    %v356 = vunpack.c.l.b16 %v117
    %v357 = vunpack.c.h.b16 %v117
    %v358 = vunpack.c.l.b16 %v118
    %v359 = vunpack.c.h.b16 %v118
    %v360 = vunpack.c.l.b16 %v119
    %v361 = vunpack.c.h.b16 %v119
    %v362 = vunpack.c.l.b16 %v120
    %v363 = vunpack.c.h.b16 %v120
    %v364 = vunpack.c.l.b16 %v121
    %v365 = vunpack.c.h.b16 %v121
    %v366 = vunpack.c.l.b16 %v122
    %v367 = vunpack.c.h.b16 %v122
    %v368 = vunpack.c.l.b16 %v123
    %v369 = vunpack.c.h.b16 %v123
    %v370 = vunpack.c.l.b16 %v124
    %v371 = vunpack.c.h.b16 %v124
    %v372 = vunpack.c.l.b16 %v125
    %v373 = vunpack.c.h.b16 %v125
    %v374 = vunpack.c.l.b16 %v126
    %v375 = vunpack.c.h.b16 %v126
    %v376 = vunpack.c.l.b16 %v127
    %v377 = vunpack.c.h.b16 %v127
    %v378 = vunpack.c.l.b16 %v128
    %v379 = vunpack.c.h.b16 %v128
    %v380 = vunpack.c.l.b16 %v129
    %v381 = vunpack.c.h.b16 %v129
    %v382 = vunpack.c.l.b16 %v130
    %v383 = vunpack.c.h.b16 %v130
    %v384 = vunpack.c.l.b16 %v131
    %v385 = vunpack.c.h.b16 %v131
    %v386 = vunpack.c.l.b16 %v132
    %v387 = vunpack.c.h.b16 %v132
    %v388 = vunpack.c.l.b16 %v133
    %v389 = vunpack.c.h.b16 %v133
    %v390 = vunpack.c.l.b16 %v134
    %v391 = vunpack.c.h.b16 %v134
    %v392 = vunpack.c.l.b16 %v135
    %v393 = vunpack.c.h.b16 %v135
    %v394 = vunpack.c.l.b16 %v136
    %v395 = vunpack.c.h.b16 %v136
    %v396 = vunpack.c.l.b16 %v137
    %v397 = vunpack.c.h.b16 %v137
    %v398 = vunpack.c.l.b16 %v138
    %v399 = vunpack.c.h.b16 %v138
    %v400 = vunpack.c.l.b16 %v139
    %v401 = vunpack.c.h.b16 %v139
    %v402 = vunpack.c.l.b16 %v140
    %v403 = vunpack.c.h.b16 %v140
    %v404 = vunpack.c.l.b16 %v141
    %v405 = vunpack.c.h.b16 %v141
    %v406 = vunpack.c.l.b16 %v142
    %v407 = vunpack.c.h.b16 %v142
    %v408 = vunpack.c.l.b16 %v143
    %v409 = vunpack.c.h.b16 %v143
    %v410 = vunpack.c.l.b16 %v144
    %v411 = vunpack.c.h.b16 %v144
    %v412 = vunpack.c.l.b16 %v145
    %v413 = vunpack.c.h.b16 %v145
    %v414 = vunpack.c.l.b16 %v146
    %v415 = vunpack.c.h.b16 %v146
    %v416 = vunpack.c.l.b16 %v147
    %v417 = vunpack.c.h.b16 %v147
    %v418 = vunpack.c.l.b16 %v148
    %v419 = vunpack.c.h.b16 %v148
    %v420 = vunpack.c.l.b16 %v149
    %v421 = vunpack.c.h.b16 %v149
    %v422 = vunpack.c.l.b16 %v150
    %v423 = vunpack.c.h.b16 %v150
    %v424 = vunpack.c.l.b16 %v151
    %v425 = vunpack.c.h.b16 %v151
    %v426 = vunpack.c.l.b16 %v152
    %v427 = vunpack.c.h.b16 %v152
    %v428 = vunpack.c.l.b16 %v153
    %v429 = vunpack.c.h.b16 %v153
    %v430 = vunpack.c.l.b16 %v154
    %v431 = vunpack.c.h.b16 %v154
    %v432 = vunpack.c.l.b16 %v155
    %v433 = vunpack.c.h.b16 %v155
    %v434 = vunpack.c.l.b16 %v156
    %v435 = vunpack.c.h.b16 %v156
    %v436 = vunpack.c.l.b16 %v157
    %v437 = vunpack.c.h.b16 %v157
    %v438 = vunpack.c.l.b16 %v158
    %v439 = vunpack.c.h.b16 %v158
    %v440 = vunpack.c.l.b16 %v159
    %v441 = vunpack.c.h.b16 %v159
    %v442 = vunpack.c.l.b16 %v160
    %v443 = vunpack.c.h.b16 %v160
    %v444 = vunpack.c.l.b16 %v161
    %v445 = vunpack.c.h.b16 %v161
    %v446 = vunpack.c.l.b16 %v162
    %v447 = vunpack.c.h.b16 %v162
    %v448 = vunpack.c.l.b16 %v163
    %v449 = vunpack.c.h.b16 %v163
    %v450 = vunpack.c.l.b16 %v164
    %v451 = vunpack.c.h.b16 %v164
    %v452 = vunpack.c.l.b16 %v165
    %v453 = vunpack.c.h.b16 %v165
    %v454 = vunpack.c.l.b16 %v166
    %v455 = vunpack.c.h.b16 %v166
    %v456 = vunpack.c.l.b16 %v167
    %v457 = vunpack.c.h.b16 %v167
    %v458 = vunpack.c.l.b16 %v168
    %v459 = vunpack.c.h.b16 %v168
    %v460 = vunpack.c.l.b16 %v169
    %v461 = vunpack.c.h.b16 %v169
    %v462 = vunpack.c.l.b16 %v170
    %v463 = vunpack.c.h.b16 %v170
    %v464 = vunpack.c.l.b16 %v171
    %v465 = vunpack.c.h.b16 %v171
    %v466 = vunpack.c.l.b16 %v172
    %v467 = vunpack.c.h.b16 %v172
    %v468 = vunpack.c.l.b16 %v173
    %v469 = vunpack.c.h.b16 %v173
    %v470 = vunpack.c.l.b16 %v174
    %v471 = vunpack.c.h.b16 %v174
    %v472 = vunpack.c.l.b16 %v175
    %v473 = vunpack.c.h.b16 %v175
    %v474 = vunpack.c.l.b16 %v176
    %v475 = vunpack.c.h.b16 %v176
    %v476 = vunpack.c.l.b16 %v177
    %v477 = vunpack.c.h.b16 %v177
    %v478 = vunpack.c.l.b16 %v178
    %v479 = vunpack.c.h.b16 %v178
    %v480 = vunpack.c.l.b16 %v179
    %v481 = vunpack.c.h.b16 %v179
    %v482 = vunpack.c.l.b16 %v180
    %v483 = vunpack.c.h.b16 %v180
    %v484 = vunpack.c.l.b16 %v181
    %v485 = vunpack.c.h.b16 %v181
    %v486 = vunpack.c.l.b16 %v182
    %v487 = vunpack.c.h.b16 %v182
    %v488 = vunpack.c.l.b16 %v183
    %v489 = vunpack.c.h.b16 %v183
    %v490 = vunpack.c.l.b16 %v184
    %v491 = vunpack.c.h.b16 %v184
    %v492 = vunpack.c.l.b16 %v185
    %v493 = vunpack.c.h.b16 %v185
    %v494 = vunpack.c.l.b16 %v186
    %v495 = vunpack.c.h.b16 %v186
    %v496 = vunpack.c.l.b16 %v187
    %v497 = vunpack.c.h.b16 %v187
    %v498 = vunpack.c.l.b16 %v188
    %v499 = vunpack.c.h.b16 %v188
    %v500 = vunpack.c.l.b16 %v189
    %v501 = vunpack.c.h.b16 %v189
    %v502 = vunpack.c.l.b16 %v190
    %v503 = vunpack.c.h.b16 %v190
    %v504 = vunpack.c.l.b16 %v191
    %v505 = vunpack.c.h.b16 %v191
    %v506 = vunpack.c.l.b16 %v192
    %v507 = vunpack.c.h.b16 %v192
    %v508 = vunpack.c.l.b16 %v193
    %v509 = vunpack.c.h.b16 %v193
    %v510 = vunpack.c.l.b16 %v194
    %v511 = vunpack.c.h.b16 %v194
    %v512 = vunpack.c.l.b16 %v195
    %v513 = vunpack.c.h.b16 %v195
    %v514 = vunpack.c.l.b16 %v196
    %v515 = vunpack.c.h.b16 %v196
    %v516 = vunpack.c.l.b16 %v197
    %v517 = vunpack.c.h.b16 %v197
    %v518 = vunpack.c.l.b16 %v198
    %v519 = vunpack.c.h.b16 %v198
    %v520 = vpack.c.b16 %v330, %v328
    %v521 = vpack.c.b16 %v331, %v329
    %v522 = vpack.c.b16 %v334, %v332
    %v523 = vpack.c.b16 %v335, %v333
    %v524 = vpack.c.b16 %v338, %v336
    %v525 = vpack.c.b16 %v339, %v337
    %v526 = vpack.c.b16 %v342, %v340
    %v527 = vpack.c.b16 %v343, %v341
    %v528 = vpack.c.b16 %v346, %v344
    %v529 = vpack.c.b16 %v347, %v345
    %v530 = vpack.c.b16 %v350, %v348
    %v531 = vpack.c.b16 %v351, %v349
    %v532 = vpack.c.b16 %v354, %v352
    %v533 = vpack.c.b16 %v355, %v353
    %v534 = vpack.c.b16 %v358, %v356
    %v535 = vpack.c.b16 %v359, %v357
    %v536 = vpack.c.b16 %v362, %v360
    %v537 = vpack.c.b16 %v363, %v361
    %v538 = vpack.c.b16 %v366, %v364
    %v539 = vpack.c.b16 %v367, %v365
    %v540 = vpack.c.b16 %v370, %v368
    %v541 = vpack.c.b16 %v371, %v369
    %v542 = vpack.c.b16 %v374, %v372
    %v543 = vpack.c.b16 %v375, %v373
    %v544 = vpack.c.b16 %v378, %v376
    %v545 = vpack.c.b16 %v379, %v377
    %v546 = vpack.c.b16 %v382, %v380
    %v547 = vpack.c.b16 %v383, %v381
    %v548 = vpack.c.b16 %v386, %v384
    %v549 = vpack.c.b16 %v387, %v385
    %v550 = vpack.c.b16 %v390, %v388
    %v551 = vpack.c.b16 %v391, %v389
    %v552 = vpack.c.b16 %v394, %v392
    %v553 = vpack.c.b16 %v395, %v393
    %v554 = vpack.c.b16 %v398, %v396
    %v555 = vpack.c.b16 %v399, %v397
    %v556 = vpack.c.b16 %v402, %v400
    %v557 = vpack.c.b16 %v403, %v401
    %v558 = vpack.c.b16 %v406, %v404
    %v559 = vpack.c.b16 %v407, %v405
    %v560 = vpack.c.b16 %v410, %v408
    %v561 = vpack.c.b16 %v411, %v409
    %v562 = vpack.c.b16 %v414, %v412
    %v563 = vpack.c.b16 %v415, %v413
    %v564 = vpack.c.b16 %v418, %v416
    %v565 = vpack.c.b16 %v419, %v417
    %v566 = vpack.c.b16 %v422, %v420
    %v567 = vpack.c.b16 %v423, %v421
    %v568 = vpack.c.b16 %v426, %v424
    %v569 = vpack.c.b16 %v427, %v425
    %v570 = vpack.c.b16 %v430, %v428
    %v571 = vpack.c.b16 %v431, %v429
    %v572 = vpack.c.b16 %v434, %v432
    %v573 = vpack.c.b16 %v435, %v433
    %v574 = vpack.c.b16 %v438, %v436
    %v575 = vpack.c.b16 %v439, %v437
    %v576 = vpack.c.b16 %v442, %v440
    %v577 = vpack.c.b16 %v443, %v441
    %v578 = vpack.c.b16 %v446, %v444
    %v579 = vpack.c.b16 %v447, %v445
    %v580 = vpack.c.b16 %v450, %v448
    %v581 = vpack.c.b16 %v451, %v449
    %v582 = vpack.c.b16 %v454, %v452
    %v583 = vpack.c.b16 %v455, %v453
    %v584 = vpack.c.b16 %v458, %v456
    %v585 = vpack.c.b16 %v459, %v457
    %v586 = vpack.c.b16 %v462, %v460
    %v587 = vpack.c.b16 %v463, %v461
    %v588 = vpack.c.b16 %v466, %v464
    %v589 = vpack.c.b16 %v467, %v465
    %v590 = vpack.c.b16 %v470, %v468
    %v591 = vpack.c.b16 %v471, %v469
    %v592 = vpack.c.b16 %v474, %v472
    %v593 = vpack.c.b16 %v475, %v473
    %v594 = vpack.c.b16 %v478, %v476
    %v595 = vpack.c.b16 %v479, %v477
    %v596 = vpack.c.b16 %v482, %v480
    %v597 = vpack.c.b16 %v483, %v481
    %v598 = vpack.c.b16 %v486, %v484
    %v599 = vpack.c.b16 %v487, %v485
    %v600 = vpack.c.b16 %v490, %v488
    %v601 = vpack.c.b16 %v491, %v489
    %v602 = vpack.c.b16 %v494, %v492
    %v603 = vpack.c.b16 %v495, %v493
    %v604 = vpack.c.b16 %v498, %v496
    %v605 = vpack.c.b16 %v499, %v497
    %v606 = vpack.c.b16 %v502, %v500
    %v607 = vpack.c.b16 %v503, %v501
    %v608 = vpack.c.b16 %v506, %v504
    %v609 = vpack.c.b16 %v507, %v505
    %v610 = vpack.c.b16 %v510, %v508
    %v611 = vpack.c.b16 %v511, %v509
    %v612 = vpack.c.b16 %v514, %v512
    %v613 = vpack.c.b16 %v515, %v513
    %v614 = vpack.c.b16 %v518, %v516
    %v615 = vpack.c.b16 %v519, %v517
    %712 = vmatprep.subr.bf16.mxu0 %v535
    %713 = vmatpush1.bf16.msra.mxu0 %v534
    %714 = vmatprep.subr.bf16.mxu0 %v533
    %715 = vmatpush1.bf16.msra.mxu0 %v532
    %716 = vmatprep.subr.bf16.mxu0 %v531
    %717 = vmatpush1.bf16.msra.mxu0 %v530
    %718 = vmatprep.subr.bf16.mxu0 %v529
    %719 = vmatpush1.bf16.msra.mxu0 %v528
    %720 = vmatprep.subr.bf16.mxu0 %v527
    %721 = vmatpush1.bf16.msra.mxu0 %v526
    %722 = vmatprep.subr.bf16.mxu0 %v525
    %723 = vmatpush1.bf16.msra.mxu0 %v524
    %724 = vmatprep.subr.bf16.mxu0 %v523
    %725 = vmatpush1.bf16.msra.mxu0 %v522
    %726 = vmatprep.subr.bf16.mxu0 %v521
    %727 = vmatpush1.bf16.msra.mxu0 %v520
    %728 = vmatprep.subr.bf16.mxu0 %v551
    %729 = vmatpush2.bf16.msra.mxu0 %v550
    %730 = vmatprep.subr.bf16.mxu0 %v549
    %731 = vmatpush2.bf16.msra.mxu0 %v548
    %732 = vmatprep.subr.bf16.mxu0 %v547
    %733 = vmatpush2.bf16.msra.mxu0 %v546
    %734 = vmatprep.subr.bf16.mxu0 %v545
    %735 = vmatpush2.bf16.msra.mxu0 %v544
    %736 = vmatprep.subr.bf16.mxu0 %v543
    %737 = vmatpush2.bf16.msra.mxu0 %v542
    %738 = vmatprep.subr.bf16.mxu0 %v541
    %739 = vmatpush2.bf16.msra.mxu0 %v540
    %740 = vmatprep.subr.bf16.mxu0 %v539
    %741 = vmatpush2.bf16.msra.mxu0 %v538
    %742 = vmatprep.subr.bf16.mxu0 %v537
    %743 = vmatpush2.bf16.msra.mxu0 %v536
    %744 = vmatprep.mubr.bf16.mxu0 %v221
    %745 = vmatmul.mubr.bf16.gmra.mxu0 %v220
    %v746 = vpop.f32.mrf.mxu0
    %v747 = vadd.f32 %v204, %v746
    %v748 = vpop.f32.mrf.mxu0
    %v749 = vadd.f32 %v208, %v748
    %v750 = vpop.f32.mrf.mxu0
    %v751 = vpop.f32.mrf.mxu0
    %752 = vdwg.mxu0
    %753 = vmatprep.subr.bf16.mxu0 %v567
    %754 = vmatpush1.bf16.msra.mxu0 %v566
    %755 = vmatprep.subr.bf16.mxu0 %v565
    %756 = vmatpush1.bf16.msra.mxu0 %v564
    %757 = vmatprep.subr.bf16.mxu0 %v563
    %758 = vmatpush1.bf16.msra.mxu0 %v562
    %759 = vmatprep.subr.bf16.mxu0 %v561
    %760 = vmatpush1.bf16.msra.mxu0 %v560
    %761 = vmatprep.subr.bf16.mxu0 %v559
    %762 = vmatpush1.bf16.msra.mxu0 %v558
    %763 = vmatprep.subr.bf16.mxu0 %v557
    %764 = vmatpush1.bf16.msra.mxu0 %v556
    %765 = vmatprep.subr.bf16.mxu0 %v555
    %766 = vmatpush1.bf16.msra.mxu0 %v554
    %767 = vmatprep.subr.bf16.mxu0 %v553
    %768 = vmatpush1.bf16.msra.mxu0 %v552
    %769 = vmatprep.subr.bf16.mxu0 %v583
    %770 = vmatpush2.bf16.msra.mxu0 %v582
    %771 = vmatprep.subr.bf16.mxu0 %v581
    %772 = vmatpush2.bf16.msra.mxu0 %v580
    %773 = vmatprep.subr.bf16.mxu0 %v579
    %774 = vmatpush2.bf16.msra.mxu0 %v578
    %775 = vmatprep.subr.bf16.mxu0 %v577
    %776 = vmatpush2.bf16.msra.mxu0 %v576
    %777 = vmatprep.subr.bf16.mxu0 %v575
    %778 = vmatpush2.bf16.msra.mxu0 %v574
    %779 = vmatprep.subr.bf16.mxu0 %v573
    %780 = vmatpush2.bf16.msra.mxu0 %v572
    %781 = vmatprep.subr.bf16.mxu0 %v571
    %782 = vmatpush2.bf16.msra.mxu0 %v570
    %783 = vmatprep.subr.bf16.mxu0 %v569
    %784 = vmatpush2.bf16.msra.mxu0 %v568
    %785 = vmatprep.mubr.bf16.mxu0 %v223
    %786 = vmatmul.mubr.bf16.gmra.mxu0 %v222
    %v787 = vpop.f32.mrf.mxu0
    %v788 = vadd.f32 %v747, %v787
    %v789 = vpop.f32.mrf.mxu0
    %v790 = vadd.f32 %v749, %v789
    %v791 = vpop.f32.mrf.mxu0
    %v792 = vpop.f32.mrf.mxu0
    %793 = vdwg.mxu0
    %794 = vmatprep.subr.bf16.mxu0 %v599
    %795 = vmatpush1.bf16.msra.mxu0 %v598
    %796 = vmatprep.subr.bf16.mxu0 %v597
    %797 = vmatpush1.bf16.msra.mxu0 %v596
    %798 = vmatprep.subr.bf16.mxu0 %v595
    %799 = vmatpush1.bf16.msra.mxu0 %v594
    %800 = vmatprep.subr.bf16.mxu0 %v593
    %801 = vmatpush1.bf16.msra.mxu0 %v592
    %802 = vmatprep.subr.bf16.mxu0 %v591
    %803 = vmatpush1.bf16.msra.mxu0 %v590
    %804 = vmatprep.subr.bf16.mxu0 %v589
    %805 = vmatpush1.bf16.msra.mxu0 %v588
    %806 = vmatprep.subr.bf16.mxu0 %v587
    %807 = vmatpush1.bf16.msra.mxu0 %v586
    %808 = vmatprep.subr.bf16.mxu0 %v585
    %809 = vmatpush1.bf16.msra.mxu0 %v584
    %810 = vmatprep.subr.bf16.mxu0 %v615
    %811 = vmatpush2.bf16.msra.mxu0 %v614
    %812 = vmatprep.subr.bf16.mxu0 %v613
    %813 = vmatpush2.bf16.msra.mxu0 %v612
    %814 = vmatprep.subr.bf16.mxu0 %v611
    %815 = vmatpush2.bf16.msra.mxu0 %v610
    %816 = vmatprep.subr.bf16.mxu0 %v609
    %817 = vmatpush2.bf16.msra.mxu0 %v608
    %818 = vmatprep.subr.bf16.mxu0 %v607
    %819 = vmatpush2.bf16.msra.mxu0 %v606
    %820 = vmatprep.subr.bf16.mxu0 %v605
    %821 = vmatpush2.bf16.msra.mxu0 %v604
    %822 = vmatprep.subr.bf16.mxu0 %v603
    %823 = vmatpush2.bf16.msra.mxu0 %v602
    %824 = vmatprep.subr.bf16.mxu0 %v601
    %825 = vmatpush2.bf16.msra.mxu0 %v600
    %826 = vmatprep.mubr.bf16.mxu0 %v225
    %827 = vmatmul.mubr.bf16.gmra.mxu0 %v224
    %v828 = vpop.f32.mrf.mxu0
    %v829 = vadd.f32 %v788, %v828
    %v830 = vpop.f32.mrf.mxu0
    %v831 = vadd.f32 %v790, %v830
    %v832 = vpop.f32.mrf.mxu0
    %v833 = vpop.f32.mrf.mxu0
    %834 = vdwg.mxu0
    %v835 = vmax.f32 %v829, 0.0
    %v836 = vmax.f32 %v831, 0.0
    %v837 = vpack.c.bf16 %v835, %v835
    %v838 = vpack.c.bf16 %v836, %v836
    %v839 = vld [vmem:[#allocation7] sm:$0xf]
    %v840 = vld [vmem:[#allocation7 + $0x4] sm:$0xf]
    %v841 = vld [vmem:[#allocation7 + $0x8] sm:$0xf]
    %v842 = vld [vmem:[#allocation7 + $0xc] sm:$0xf]
    %v843 = vld [vmem:[#allocation7 + $0x10] sm:$0xf]
    %v844 = vld [vmem:[#allocation7 + $0x14] sm:$0xf]
    %v845 = vld [vmem:[#allocation7 + $0x18] sm:$0xf]
    %v846 = vld [vmem:[#allocation7 + $0x1c] sm:$0xf]
    %v847 = vld [vmem:[#allocation7 + $0x20] sm:$0xf]
    %v848 = vld [vmem:[#allocation7 + $0x24] sm:$0xf]
    %v849 = vld [vmem:[#allocation7 + $0x28] sm:$0xf]
    %v850 = vld [vmem:[#allocation7 + $0x2c] sm:$0xf]
    %v851 = vld [vmem:[#allocation7 + $0x30] sm:$0xf]
    %v852 = vld [vmem:[#allocation7 + $0x34] sm:$0xf]
    %v853 = vld [vmem:[#allocation7 + $0x38] sm:$0xf]
    %v854 = vld [vmem:[#allocation7 + $0x3c] sm:$0xf]
    %v855 = vld [vmem:[#allocation7 + $0x40] sm:$0xf]
    %v856 = vld [vmem:[#allocation7 + $0x44] sm:$0xf]
    %v857 = vld [vmem:[#allocation7 + $0x48] sm:$0xf]
    %v858 = vld [vmem:[#allocation7 + $0x4c] sm:$0xf]
    %v859 = vld [vmem:[#allocation7 + $0x50] sm:$0xf]
    %v860 = vld [vmem:[#allocation7 + $0x54] sm:$0xf]
    %v861 = vld [vmem:[#allocation7 + $0x58] sm:$0xf]
    %v862 = vld [vmem:[#allocation7 + $0x5c] sm:$0xf]
    %v863 = vld [vmem:[#allocation7 + $0x60] sm:$0xf]
    %v864 = vld [vmem:[#allocation7 + $0x64] sm:$0xf]
    %v865 = vld [vmem:[#allocation7 + $0x68] sm:$0xf]
    %v866 = vld [vmem:[#allocation7 + $0x6c] sm:$0xf]
    %v867 = vld [vmem:[#allocation7 + $0x70] sm:$0xf]
    %v868 = vld [vmem:[#allocation7 + $0x74] sm:$0xf]
    %v869 = vld [vmem:[#allocation7 + $0x78] sm:$0xf]
    %v870 = vld [vmem:[#allocation7 + $0x7c] sm:$0xf]
    %v871 = vld [vmem:[%s4] sm:$0x1]
    %v873 = vlaneseq
    %v874 = vshrl.u32 %v873, 7
    %v875 = vsub.s32 0, %v874
    %v876 = vrot.slane %v871, %v875
    %v910 = vunpack.c.l.b16 %v839
    %v911 = vunpack.c.l.b16 %v840
    %v912 = vunpack.c.l.b16 %v841
    %v913 = vunpack.c.l.b16 %v842
    %v914 = vunpack.c.l.b16 %v843
    %v915 = vunpack.c.l.b16 %v844
    %v916 = vunpack.c.l.b16 %v845
    %v917 = vunpack.c.l.b16 %v846
    %v918 = vunpack.c.l.b16 %v847
    %v919 = vunpack.c.l.b16 %v848
    %v920 = vunpack.c.l.b16 %v849
    %v921 = vunpack.c.l.b16 %v850
    %v922 = vunpack.c.l.b16 %v851
    %v923 = vunpack.c.l.b16 %v852
    %v924 = vunpack.c.l.b16 %v853
    %v925 = vunpack.c.l.b16 %v854
    %v926 = vunpack.c.l.b16 %v855
    %v927 = vunpack.c.l.b16 %v856
    %v928 = vunpack.c.l.b16 %v857
    %v929 = vunpack.c.l.b16 %v858
    %v930 = vunpack.c.l.b16 %v859
    %v931 = vunpack.c.l.b16 %v860
    %v932 = vunpack.c.l.b16 %v861
    %v933 = vunpack.c.l.b16 %v862
    %v934 = vunpack.c.l.b16 %v863
    %v935 = vunpack.c.l.b16 %v864
    %v936 = vunpack.c.l.b16 %v865
    %v937 = vunpack.c.l.b16 %v866
    %v938 = vunpack.c.l.b16 %v867
    %v939 = vunpack.c.l.b16 %v868
    %v940 = vunpack.c.l.b16 %v869
    %v941 = vunpack.c.l.b16 %v870
    %v942 = vpack.c.b16 %v911, %v910
    %v943 = vpack.c.b16 %v913, %v912
    %v944 = vpack.c.b16 %v915, %v914
    %v945 = vpack.c.b16 %v917, %v916
    %v946 = vpack.c.b16 %v919, %v918
    %v947 = vpack.c.b16 %v921, %v920
    %v948 = vpack.c.b16 %v923, %v922
    %v949 = vpack.c.b16 %v925, %v924
    %v950 = vpack.c.b16 %v927, %v926
    %v951 = vpack.c.b16 %v929, %v928
    %v952 = vpack.c.b16 %v931, %v930
    %v953 = vpack.c.b16 %v933, %v932
    %v954 = vpack.c.b16 %v935, %v934
    %v955 = vpack.c.b16 %v937, %v936
    %v956 = vpack.c.b16 %v939, %v938
    %v957 = vpack.c.b16 %v941, %v940
    %974 = vmatprep.subr.bf16.mxu0 0
    %975 = vmatpush1.bf16.msra.mxu0 %v949
    %976 = vmatprep.subr.bf16.mxu0 0
    %977 = vmatpush1.bf16.msra.mxu0 %v948
    %978 = vmatprep.subr.bf16.mxu0 0
    %979 = vmatpush1.bf16.msra.mxu0 %v947
    %980 = vmatprep.subr.bf16.mxu0 0
    %981 = vmatpush1.bf16.msra.mxu0 %v946
    %982 = vmatprep.subr.bf16.mxu0 0
    %983 = vmatpush1.bf16.msra.mxu0 %v945
    %984 = vmatprep.subr.bf16.mxu0 0
    %985 = vmatpush1.bf16.msra.mxu0 %v944
    %986 = vmatprep.subr.bf16.mxu0 0
    %987 = vmatpush1.bf16.msra.mxu0 %v943
    %988 = vmatprep.subr.bf16.mxu0 0
    %989 = vmatpush1.bf16.msra.mxu0 %v942
    %990 = vmatprep.subr.bf16.mxu0 0
    %991 = vmatpush2.bf16.msra.mxu0 %v957
    %992 = vmatprep.subr.bf16.mxu0 0
    %993 = vmatpush2.bf16.msra.mxu0 %v956
    %994 = vmatprep.subr.bf16.mxu0 0
    %995 = vmatpush2.bf16.msra.mxu0 %v955
    %996 = vmatprep.subr.bf16.mxu0 0
    %997 = vmatpush2.bf16.msra.mxu0 %v954
    %998 = vmatprep.subr.bf16.mxu0 0
    %999 = vmatpush2.bf16.msra.mxu0 %v953
    %1000 = vmatprep.subr.bf16.mxu0 0
    %1001 = vmatpush2.bf16.msra.mxu0 %v952
    %1002 = vmatprep.subr.bf16.mxu0 0
    %1003 = vmatpush2.bf16.msra.mxu0 %v951
    %1004 = vmatprep.subr.bf16.mxu0 0
    %1005 = vmatpush2.bf16.msra.mxu0 %v950
    %1006 = vmatprep.mubr.bf16.mxu0 %v838
    %1007 = vmatmul.mubr.bf16.gmra.mxu0 %v837
    %v1008 = vpop.f32.mrf.mxu0
    %v1009 = vadd.f32 %v876, %v1008
    %v1010 = vpop.f32.mrf.mxu0
    %v1011 = vpop.f32.mrf.mxu0
    %v1012 = vpop.f32.mrf.mxu0
    %1013 = vdwg.mxu0
    %v1014 = vmax.f32 %v1009, 0.0
    %v1015 = vpack.c.bf16 %v1014, %v1014
    %v1016 = vld [vmem:[#allocation8] sm:$0xf]
    %v1017 = vld [vmem:[#allocation8 + $0x4] sm:$0xf]
    %v1018 = vld [vmem:[#allocation8 + $0x8] sm:$0xf]
    %v1019 = vld [vmem:[#allocation8 + $0xc] sm:$0xf]
    %v1020 = vld [vmem:[#allocation8 + $0x10] sm:$0xf]
    %v1021 = vld [vmem:[#allocation8 + $0x14] sm:$0xf]
    %v1022 = vld [vmem:[#allocation8 + $0x18] sm:$0xf]
    %v1023 = vld [vmem:[#allocation8 + $0x1c] sm:$0xf]
    %v1024 = vld [vmem:[#allocation8 + $0x20] sm:$0xf]
    %v1025 = vld [vmem:[#allocation8 + $0x24] sm:$0xf]
    %v1026 = vld [vmem:[#allocation8 + $0x28] sm:$0xf]
    %v1027 = vld [vmem:[#allocation8 + $0x2c] sm:$0xf]
    %v1028 = vld [vmem:[#allocation8 + $0x30] sm:$0xf]
    %v1029 = vld [vmem:[#allocation8 + $0x34] sm:$0xf]
    %v1030 = vld [vmem:[#allocation8 + $0x38] sm:$0xf]
    %v1031 = vld [vmem:[#allocation8 + $0x3c] sm:$0xf]
    %v1032 = vld [vmem:[%s6] sm:$0x1]
    %v1034 = vlaneseq
    %v1035 = vshrl.u32 %v1034, 7
    %v1036 = vsub.s32 0, %v1035
    %v1037 = vrot.slane %v1032, %v1036
    %v1055 = vunpack.c.l.b16 %v1016
    %v1056 = vunpack.c.l.b16 %v1017
    %v1057 = vunpack.c.l.b16 %v1018
    %v1058 = vunpack.c.l.b16 %v1019
    %v1059 = vunpack.c.l.b16 %v1020
    %v1060 = vunpack.c.l.b16 %v1021
    %v1061 = vunpack.c.l.b16 %v1022
    %v1062 = vunpack.c.l.b16 %v1023
    %v1063 = vunpack.c.l.b16 %v1024
    %v1064 = vunpack.c.l.b16 %v1025
    %v1065 = vunpack.c.l.b16 %v1026
    %v1066 = vunpack.c.l.b16 %v1027
    %v1067 = vunpack.c.l.b16 %v1028
    %v1068 = vunpack.c.l.b16 %v1029
    %v1069 = vunpack.c.l.b16 %v1030
    %v1070 = vunpack.c.l.b16 %v1031
    %v1071 = vpack.c.b16 %v1056, %v1055
    %v1072 = vpack.c.b16 %v1058, %v1057
    %v1073 = vpack.c.b16 %v1060, %v1059
    %v1074 = vpack.c.b16 %v1062, %v1061
    %v1075 = vpack.c.b16 %v1064, %v1063
    %v1076 = vpack.c.b16 %v1066, %v1065
    %v1077 = vpack.c.b16 %v1068, %v1067
    %v1078 = vpack.c.b16 %v1070, %v1069
    %1087 = vmatprep.subr.bf16.mxu0 0
    %1088 = vmatpush1.bf16.msra.mxu0 %v1078
    %1089 = vmatprep.subr.bf16.mxu0 0
    %1090 = vmatpush1.bf16.msra.mxu0 %v1077
    %1091 = vmatprep.subr.bf16.mxu0 0
    %1092 = vmatpush1.bf16.msra.mxu0 %v1076
    %1093 = vmatprep.subr.bf16.mxu0 0
    %1094 = vmatpush1.bf16.msra.mxu0 %v1075
    %1095 = vmatprep.subr.bf16.mxu0 0
    %1096 = vmatpush1.bf16.msra.mxu0 %v1074
    %1097 = vmatprep.subr.bf16.mxu0 0
    %1098 = vmatpush1.bf16.msra.mxu0 %v1073
    %1099 = vmatprep.subr.bf16.mxu0 0
    %1100 = vmatpush1.bf16.msra.mxu0 %v1072
    %1101 = vmatprep.subr.bf16.mxu0 0
    %1102 = vmatpush1.bf16.msra.mxu0 %v1071
    %1103 = vmatprep.subr.bf16.mxu0 0
    %1104 = vmatpush2.bf16.msra.mxu0 0
    %1105 = vmatprep.subr.bf16.mxu0 0
    %1106 = vmatpush2.bf16.msra.mxu0 0
    %1107 = vmatprep.subr.bf16.mxu0 0
    %1108 = vmatpush2.bf16.msra.mxu0 0
    %1109 = vmatprep.subr.bf16.mxu0 0
    %1110 = vmatpush2.bf16.msra.mxu0 0
    %1111 = vmatprep.subr.bf16.mxu0 0
    %1112 = vmatpush2.bf16.msra.mxu0 0
    %1113 = vmatprep.subr.bf16.mxu0 0
    %1114 = vmatpush2.bf16.msra.mxu0 0
    %1115 = vmatprep.subr.bf16.mxu0 0
    %1116 = vmatpush2.bf16.msra.mxu0 0
    %1117 = vmatprep.subr.bf16.mxu0 0
    %1118 = vmatpush2.bf16.msra.mxu0 0
    %1119 = vmatprep.mubr.bf16.mxu0 0
    %1120 = vmatmul.mubr.bf16.gmra.mxu0 %v1015
    %v1121 = vpop.f32.mrf.mxu0
    %v1122 = vadd.f32 %v1037, %v1121
    %v1123 = vpop.f32.mrf.mxu0
    %v1124 = vpop.f32.mrf.mxu0
    %v1125 = vpop.f32.mrf.mxu0
    %1126 = vdwg.mxu0
    %v1127 = vmax.f32 %v1122, 0.0
    %v1128 = vpack.c.bf16 %v1127, %v1127
    %v1129 = vld [vmem:[#allocation10] sm:$0xf]
    %v1130 = vld [vmem:[#allocation10 + $0x4] sm:$0xf]
    %v1131 = vld [vmem:[#allocation10 + $0x8] sm:$0xf]
    %v1132 = vld [vmem:[#allocation10 + $0xc] sm:$0xf]
    %v1133 = vld [vmem:[#allocation10 + $0x10] sm:$0xf]
    %v1134 = vld [vmem:[#allocation10 + $0x14] sm:$0xf]
    %v1135 = vld [vmem:[#allocation10 + $0x18] sm:$0xf]
    %v1136 = vld [vmem:[#allocation10 + $0x1c] sm:$0xf]
    %v1137 = vld [vmem:[#allocation10 + $0x20] sm:$0xf]
    %v1138 = vld [vmem:[#allocation10 + $0x24] sm:$0xf]
    %v1139 = vld [vmem:[#allocation10 + $0x28] sm:$0xf]
    %v1140 = vld [vmem:[#allocation10 + $0x2c] sm:$0xf]
    %v1141 = vld [vmem:[#allocation10 + $0x30] sm:$0xf]
    %v1142 = vld [vmem:[#allocation10 + $0x34] sm:$0xf]
    %v1143 = vld [vmem:[#allocation10 + $0x38] sm:$0xf]
    %v1144 = vld [vmem:[#allocation10 + $0x3c] sm:$0xf]
    %v1145 = vld [vmem:[%s8] sm:$0x1]
    %v1147 = vlaneseq
    %v1148 = vshrl.u32 %v1147, 7
    %v1149 = vsub.s32 0, %v1148
    %v1150 = vrot.slane %v1145, %v1149
    %v1168 = vunpack.c.l.b16 %v1129
    %v1169 = vunpack.c.l.b16 %v1130
    %v1170 = vunpack.c.l.b16 %v1131
    %v1171 = vunpack.c.l.b16 %v1132
    %v1172 = vunpack.c.l.b16 %v1133
    %v1173 = vunpack.c.l.b16 %v1134
    %v1174 = vunpack.c.l.b16 %v1135
    %v1175 = vunpack.c.l.b16 %v1136
    %v1176 = vunpack.c.l.b16 %v1137
    %v1177 = vunpack.c.l.b16 %v1138
    %v1178 = vunpack.c.l.b16 %v1139
    %v1179 = vunpack.c.l.b16 %v1140
    %v1180 = vunpack.c.l.b16 %v1141
    %v1181 = vunpack.c.l.b16 %v1142
    %v1182 = vunpack.c.l.b16 %v1143
    %v1183 = vunpack.c.l.b16 %v1144
    %v1184 = vpack.c.b16 %v1169, %v1168
    %v1185 = vpack.c.b16 %v1171, %v1170
    %v1186 = vpack.c.b16 %v1173, %v1172
    %v1187 = vpack.c.b16 %v1175, %v1174
    %v1188 = vpack.c.b16 %v1177, %v1176
    %v1189 = vpack.c.b16 %v1179, %v1178
    %v1190 = vpack.c.b16 %v1181, %v1180
    %v1191 = vpack.c.b16 %v1183, %v1182
    %1200 = vmatprep.subr.bf16.mxu0 0
    %1201 = vmatpush1.bf16.msra.mxu0 %v1191
    %1202 = vmatprep.subr.bf16.mxu0 0
    %1203 = vmatpush1.bf16.msra.mxu0 %v1190
    %1204 = vmatprep.subr.bf16.mxu0 0
    %1205 = vmatpush1.bf16.msra.mxu0 %v1189
    %1206 = vmatprep.subr.bf16.mxu0 0
    %1207 = vmatpush1.bf16.msra.mxu0 %v1188
    %1208 = vmatprep.subr.bf16.mxu0 0
    %1209 = vmatpush1.bf16.msra.mxu0 %v1187
    %1210 = vmatprep.subr.bf16.mxu0 0
    %1211 = vmatpush1.bf16.msra.mxu0 %v1186
    %1212 = vmatprep.subr.bf16.mxu0 0
    %1213 = vmatpush1.bf16.msra.mxu0 %v1185
    %1214 = vmatprep.subr.bf16.mxu0 0
    %1215 = vmatpush1.bf16.msra.mxu0 %v1184
    %1216 = vmatprep.subr.bf16.mxu0 0
    %1217 = vmatpush2.bf16.msra.mxu0 0
    %1218 = vmatprep.subr.bf16.mxu0 0
    %1219 = vmatpush2.bf16.msra.mxu0 0
    %1220 = vmatprep.subr.bf16.mxu0 0
    %1221 = vmatpush2.bf16.msra.mxu0 0
    %1222 = vmatprep.subr.bf16.mxu0 0
    %1223 = vmatpush2.bf16.msra.mxu0 0
    %1224 = vmatprep.subr.bf16.mxu0 0
    %1225 = vmatpush2.bf16.msra.mxu0 0
    %1226 = vmatprep.subr.bf16.mxu0 0
    %1227 = vmatpush2.bf16.msra.mxu0 0
    %1228 = vmatprep.subr.bf16.mxu0 0
    %1229 = vmatpush2.bf16.msra.mxu0 0
    %1230 = vmatprep.subr.bf16.mxu0 0
    %1231 = vmatpush2.bf16.msra.mxu0 0
    %1232 = vmatprep.mubr.bf16.mxu0 0
    %1233 = vmatmul.mubr.bf16.gmra.mxu0 %v1128
    %v1234 = vpop.f32.mrf.mxu0
    %v1235 = vadd.f32 %v1150, %v1234
    %v1236 = vpop.f32.mrf.mxu0
    %v1237 = vpop.f32.mrf.mxu0
    %v1238 = vpop.f32.mrf.mxu0
    %1239 = vdwg.mxu0
    %1240 = vst [vmem:[#allocation11] sm:$0xff] %v1235
    // Predicated region
    $region58: #{tpu_custom_call.1} parent=1 // pred_check
      _
    $region59: #{tpu_custom_call.1} parent=1 // pred_check_branch
      %1242 = sbr.rel (0) target = $region61
    $region60: #{tpu_custom_call.1} parent=1 // pred_region
      %s1244 = ssub.s32 128, 128
      %1245 = vsyncadd [#allocation4], %s1244
      %s1247 = sshll.u32 [#allocation11], 4
      %s1248 = int_to_ptr.vmem [resolvable:$true] %s1247
      %1250 = dma.vmem_to_hbm [thread:$0]  %s1248, 128, %s9, [#allocation4]
    $region61: #{tpu_custom_call.1} parent=1 // pred_fallthru
      _
    // Predicated region
    $region62: #{tpu_custom_call.1} parent=1 // pred_check
      _
    $region63: #{tpu_custom_call.1} parent=1 // pred_check_branch
      %1252 = sbr.rel (0) target = $region65
    $region64: #{tpu_custom_call.1} parent=1 // pred_region
      %1253 = dma.done [#allocation4], 128
    $region65: #{tpu_custom_call.1} parent=1 // pred_fallthru
      _
    %1254 = vsyncpa [#allocation3], 1
    %1255 = vsyncpa [#allocation6], 1
    %1256 = vsyncpa [#allocation9], 1
    %1257 = vsyncpa [#allocation4], 1

</llo_original>
